<compile_context>
chip_gen: v7x
topology: tpu7x:2x2x1
jax: 0.10.0
libtpu: 0.0.40
codegen_flags: <defaults>
</compile_context>

<pallas_src>
import functools

import jax
import jax.numpy as jnp
from jax.experimental import pallas as pl
from jax.experimental.pallas import tpu as pltpu

LANES = 128                           # lane width (last dim of the slab view)
TILE_M_MAX = 4096                     # sublane rows per block (2 MiB in f32)
FUSED_MAX_BYTES = 2 * 1024 * 1024     # fused single-pass path if slab <= this
VMEM_LIMIT_BYTES = 32 * 1024 * 1024   # safe on v5e/v6e (128 MiB) and v7x (64 MiB)


def _fused_kernel(x_ref, o_ref, *, n_valid, bits, clip_val, need_mask):
    """Whole tensor resident in VMEM: reduce + quantize in one pass (2N HBM)."""
    w = jnp.clip(x_ref[...].astype(jnp.float32), -clip_val, clip_val)
    if need_mask:
        row = jax.lax.broadcasted_iota(jnp.int32, w.shape, 0)
        lane = jax.lax.broadcasted_iota(jnp.int32, w.shape, 1)
        valid = (row * LANES + lane) < n_valid
        mn = jnp.min(jnp.where(valid, w, jnp.inf))
        mx = jnp.max(jnp.where(valid, w, -jnp.inf))
    else:
        mn = jnp.min(w)
        mx = jnp.max(w)
    size = float(2 ** bits - 1)
    alpha = mx - mn + 1e-8
    scale = size / alpha
    inv_scale = alpha / size
    # NOTE: multiplying by the precomputed (size/alpha) instead of dividing by
    # alpha matches the PyTorch op order to within ~1 ulp of round()'s
    # argument; results can differ by one quantization step only at exact ties.
    q = jnp.round((w - mn) * scale) * inv_scale + mn
    o_ref[...] = q.astype(o_ref.dtype)


def _reduce_kernel(x_ref, stats_ref, mn_acc, mx_acc, *,
                   rem, bits, clip_val, need_mask):
    """Pass 1: element-wise min/max accumulated into VMEM scratch; on the last
    grid step reduce to scalars, clip (clip is monotone, so clipping the two
    reduced scalars == clipping every element before the reduce), and write
    (mn, scale, inv_scale) broadcast into rows 0..2 of a tiny (8,128) block."""
    i = pl.program_id(0)
    last = pl.num_programs(0) - 1

    @pl.when(i == 0)
    def _():
        mn_acc[...] = jnp.full(mn_acc.shape, jnp.inf, mn_acc.dtype)
        mx_acc[...] = jnp.full(mx_acc.shape, -jnp.inf, mx_acc.dtype)
        stats_ref[...] = jnp.zeros_like(stats_ref)

    w = x_ref[...]                    # native dtype: min/max exact, no f32 cast

    def _accum(w_mn, w_mx):
        mn_acc[...] = jnp.minimum(mn_acc[...], w_mn)
        mx_acc[...] = jnp.maximum(mx_acc[...], w_mx)

    if need_mask:
        # Tiles before the last one are always fully valid: bare min/max.
        @pl.when(i < last)
        def _():
            _accum(w, w)

        # Last tile: mask lane padding / partial-edge-block garbage so it can
        # never affect the statistics.  `rem` = #valid elements in this tile.
        @pl.when(i == last)
        def _():
            row = jax.lax.broadcasted_iota(jnp.int32, w.shape, 0)
            lane = jax.lax.broadcasted_iota(jnp.int32, w.shape, 1)
            valid = (row * LANES + lane) < rem
            _accum(jnp.where(valid, w, jnp.full(w.shape, jnp.inf, w.dtype)),
                   jnp.where(valid, w, jnp.full(w.shape, -jnp.inf, w.dtype)))
    else:
        _accum(w, w)

    @pl.when(i == last)
    def _():
        mn = jnp.clip(jnp.min(mn_acc[...]).astype(jnp.float32),
                      -clip_val, clip_val)
        mx = jnp.clip(jnp.max(mx_acc[...]).astype(jnp.float32),
                      -clip_val, clip_val)
        size = float(2 ** bits - 1)
        alpha = mx - mn + 1e-8
        scale = size / alpha
        inv_scale = alpha / size
        r = jax.lax.broadcasted_iota(jnp.int32, stats_ref.shape, 0)
        stats_ref[...] = jnp.where(r == 0, mn,
                                   jnp.where(r == 1, scale, inv_scale))


def _quant_kernel(stats_ref, x_ref, o_ref, *, clip_val):
    """Pass 2: element-wise fake quantization; pure mul/round/mul/add chain."""
    mn = stats_ref[0]
    scale = stats_ref[1]
    inv_scale = stats_ref[2]
    w = jnp.clip(x_ref[...].astype(jnp.float32), -clip_val, clip_val)
    q = jnp.round((w - mn) * scale) * inv_scale + mn
    o_ref[...] = q.astype(o_ref.dtype)


def minmax_quantize(w, bits=8, clip_val=2.5):
    """Forward of MinMaxQuantizer with dim=None (global min/max)."""
    orig_shape = w.shape
    orig_dtype = w.dtype
    clip_val = float(clip_val)
    flat = w.reshape(-1)
    n = int(flat.shape[0])
    if n == 0:
        return w

    # Lane-pad to a multiple of 128 so the (rows, 128) slab view exists.
    # TODO(synk): for *large* ragged tensors the pad + final slice are two
    # extra HBM copies; could run on the 128-aligned prefix and fold the
    # <=127-element tail via XLA instead.
    n_pad = pl.cdiv(n, LANES) * LANES
    padded = n_pad > n
    if padded:
        flat = jnp.pad(flat, (0, n_pad - n))
    x2d = flat.reshape(-1, LANES)
    M = x2d.shape[0]
    itemsize = jnp.dtype(orig_dtype).itemsize

    if n_pad * itemsize <= FUSED_MAX_BYTES:
        # ---- fused single pass: reduce + quantize on the resident slab ------
        q2d = pl.pallas_call(
            functools.partial(_fused_kernel, n_valid=n, bits=bits,
                              clip_val=clip_val, need_mask=padded),
            out_shape=jax.ShapeDtypeStruct(x2d.shape, orig_dtype),
            compiler_params=pltpu.CompilerParams(
                vmem_limit_bytes=VMEM_LIMIT_BYTES),
            cost_estimate=pl.CostEstimate(
                flops=8 * n, transcendentals=0,
                bytes_accessed=2 * n_pad * itemsize),
        )(x2d)
    else:
        # ---- tiled two-pass path for tensors that do not fit in VMEM --------
        tile_m = min(TILE_M_MAX, M)
        chunk = tile_m * LANES
        n_tiles = pl.cdiv(M, tile_m)
        need_mask = (n % chunk) != 0
        rem = n - (n_tiles - 1) * chunk      # valid elements in the last tile

        # Pass 1: statistics.  Output is one (8,128) f32 block:
        #   row 0 = mn (already clipped), row 1 = scale, row 2 = inv_scale.
        stats_blk = pl.pallas_call(
            functools.partial(_reduce_kernel, rem=rem, bits=bits,
                              clip_val=clip_val, need_mask=need_mask),
            out_shape=jax.ShapeDtypeStruct((8, LANES), jnp.float32),
            grid=(n_tiles,),
            in_specs=[pl.BlockSpec((tile_m, LANES), lambda i: (i, 0))],
            out_specs=pl.BlockSpec((8, LANES), lambda i: (0, 0)),
            scratch_shapes=[pltpu.VMEM((tile_m, LANES), orig_dtype),
                            pltpu.VMEM((tile_m, LANES), orig_dtype)],
            compiler_params=pltpu.CompilerParams(
                dimension_semantics=("arbitrary",),
                vmem_limit_bytes=VMEM_LIMIT_BYTES),
            cost_estimate=pl.CostEstimate(
                flops=2 * n, transcendentals=0,
                bytes_accessed=n_pad * itemsize),
        )(x2d)
        stats = stats_blk[0:3, 0]            # (3,) = [mn, scale, inv_scale]

        # Pass 2: element-wise fake quantization (lane-dense 2 MiB blocks).
        q2d = pl.pallas_call(
            functools.partial(_quant_kernel, clip_val=clip_val),
            out_shape=jax.ShapeDtypeStruct(x2d.shape, orig_dtype),
            grid=(n_tiles,),
            in_specs=[pl.BlockSpec(memory_space=pltpu.SMEM),
                      pl.BlockSpec((tile_m, LANES), lambda i: (i, 0))],
            out_specs=pl.BlockSpec((tile_m, LANES), lambda i: (i, 0)),
            compiler_params=pltpu.CompilerParams(
                dimension_semantics=("parallel",),
                vmem_limit_bytes=VMEM_LIMIT_BYTES),
            cost_estimate=pl.CostEstimate(
                flops=6 * n, transcendentals=0,
                bytes_accessed=2 * n_pad * itemsize),
        )(stats, x2d)

    out = q2d.reshape(-1)
    if padded:
        out = out[:n]
    return out.reshape(orig_shape)


def _reference(w, bits=8, clip_val=2.5):
    """Pure-JAX transcription of MinMaxQuantizerFunction.forward (dim=None)
    with the exact PyTorch op order (divide by alpha, then by size)."""
    w = jnp.clip(w, -clip_val, clip_val)
    mn = jnp.min(w)
    mx = jnp.max(w)
    alpha = mx - mn + 1e-8
    size = 2 ** bits - 1
    return jnp.round((w - mn) / alpha * size) / size * alpha + mn


def _check(name, x, bits=8, clip_val=2.5):
    out = jax.block_until_ready(minmax_quantize(x, bits=bits, clip_val=clip_val))
    assert out.shape == x.shape and out.dtype == x.dtype, name
    ref = _reference(x, bits=bits, clip_val=clip_val)
    wc = jnp.clip(x, -clip_val, clip_val)
    step = float((jnp.max(wc) - jnp.min(wc) + 1e-8) / (2 ** bits - 1))
    diff = jnp.abs(out.astype(jnp.float32) - ref.astype(jnp.float32))
    # Every element must be within one quantization level of the PyTorch-order
    # result (precomputed scale can flip round() only at exact .5 ties), and
    # almost all elements must agree at ulp level.
    assert float(jnp.max(diff)) <= step * 1.01 + 1e-6, name
    assert float(jnp.mean((diff > step * 0.5).astype(jnp.float32))) < 5e-3, name


if __name__ == "__main__":
    key = jax.random.PRNGKey(0)
    k1, k2, k3 = jax.random.split(key, 3)

    # conv-style weight, numel % 128 == 0 -> fused path, no masking
    x1 = jax.random.normal(k1, (2, 4, 16, 16), dtype=jnp.float32) * 3.0
    _check("fused_aligned", x1)

    # ragged numel -> fused path with lane padding + in-kernel masking
    x2 = jax.random.normal(k2, (3, 17, 23), dtype=jnp.float32) * 3.0
    _check("fused_ragged", x2)

    # larger than the fused gate -> tiled two-pass path with a partial last tile
    x3 = jax.random.normal(k3, (4352, 128), dtype=jnp.float32) * 3.0
    _check("tiled_two_pass", x3)

    print("KERNEL_OK")
</pallas_src>

<mosaic_0001>
module attributes {stable_mosaic.version = 11 : i64} {
  func.func @_fused_kernel(%arg0: memref<16x128xf32, #tpu.memory_space<vmem>>, %arg1: memref<16x128xf32, #tpu.memory_space<vmem>>) attributes {dimension_semantics = [], scalar_prefetch = 0 : i64, scratch_operands = 0 : i64, tpu.core_type = #tpu.core_type<tc>} {
    %c0 = arith.constant 0 : index
    %c0_0 = arith.constant 0 : index
    %0 = vector.load %arg0[%c0, %c0_0] : memref<16x128xf32, #tpu.memory_space<vmem>>, vector<16x128xf32>
    %cst = arith.constant -2.500000e+00 : f32
    %cst_1 = arith.constant 2.500000e+00 : f32
    %1 = vector.broadcast %cst : f32 to vector<16x128xf32>
    %2 = arith.maximumf %1, %0 : vector<16x128xf32>
    %3 = vector.broadcast %cst_1 : f32 to vector<16x128xf32>
    %4 = arith.minimumf %3, %2 : vector<16x128xf32>
    %5 = vector.shape_cast %4 : vector<16x128xf32> to vector<1x16x128xf32>
    %cst_2 = arith.constant dense<0x7F800000> : vector<1xf32>
    %6 = vector.multi_reduction <minimumf>, %5, %cst_2 [1, 2] : vector<1x16x128xf32> to vector<1xf32>
    %7 = vector.shape_cast %6 : vector<1xf32> to vector<1x1x1xf32>
    %8 = vector.extract %7[0, 0, 0] : f32 from vector<1x1x1xf32>
    %9 = vector.shape_cast %4 : vector<16x128xf32> to vector<1x16x128xf32>
    %cst_3 = arith.constant dense<0xFF800000> : vector<1xf32>
    %10 = vector.multi_reduction <maximumf>, %9, %cst_3 [1, 2] : vector<1x16x128xf32> to vector<1xf32>
    %11 = vector.shape_cast %10 : vector<1xf32> to vector<1x1x1xf32>
    %12 = vector.extract %11[0, 0, 0] : f32 from vector<1x1x1xf32>
    %13 = arith.subf %12, %8 : f32
    %cst_4 = arith.constant 9.99999993E-9 : f32
    %14 = arith.addf %13, %cst_4 : f32
    %cst_5 = arith.constant 2.550000e+02 : f32
    %15 = arith.divf %cst_5, %14 : f32
    %cst_6 = arith.constant 2.550000e+02 : f32
    %16 = arith.divf %14, %cst_6 : f32
    %17 = vector.broadcast %8 : f32 to vector<16x128xf32>
    %18 = arith.subf %4, %17 : vector<16x128xf32>
    %19 = vector.broadcast %15 : f32 to vector<16x128xf32>
    %20 = arith.mulf %18, %19 : vector<16x128xf32>
    %21 = math.roundeven %20 : vector<16x128xf32>
    %22 = vector.broadcast %16 : f32 to vector<16x128xf32>
    %23 = arith.mulf %21, %22 : vector<16x128xf32>
    %24 = vector.broadcast %8 : f32 to vector<16x128xf32>
    %25 = arith.addf %23, %24 : vector<16x128xf32>
    %c0_7 = arith.constant 0 : index
    %c0_8 = arith.constant 0 : index
    %26 = vector.load %arg1[%c0_7, %c0_8] : memref<16x128xf32, #tpu.memory_space<vmem>>, vector<16x128xf32>
    tpu.vector_store %arg1[%c0_7, %c0_8], %25 {strides = array<i32>} : memref<16x128xf32, #tpu.memory_space<vmem>>, vector<16x128xf32>,
    return
  }
}

</mosaic_0001>

<llo_original>
// kernel: tpu_custom_call.1
$region0: #{tpu_custom_call.1}
  #allocation0 [shape = 'u32[]', space=smem, size = 0x4, offset = 0x4, fixed_abs, tag = 'smem constant byte address 0x4 - core index']
  #allocation1 [shape = 'u32[144,128]{1,0:T(1,128)}', space=vmem, size = 0x12000, scoped, tag = 'internal scratch']
  %s0 = inlined_call_operand.hbm [shape: f32[16,128], index: 0, kind: input, shape index: {}]
  %s1 = inlined_call_operand.hbm [shape: f32[16,128], index: 1, kind: output, shape index: {}]
  %s2 = sld [smem:[#allocation0]]
  $region18: #{tpu_custom_call.1} parent=0
    _
  %s4 = ssub.s32 1, %s2
  %s5 = scalar_select 0, %s4, %s2
  $region1: #{tpu_custom_call.1} parent=0
    #allocation2 [shape = 'u8[8192]{0}', space=vmem, size = 0x2000, scoped, tag = 'input window, operand 0, single buffered']
    #allocation3 [shape = 's32[1]{0}', space=sflag, size = 0x4, scoped, tag = 'scoped memory for tpu_custom_call.1']
    #allocation4 [shape = 's32[1]{0}', space=sflag, size = 0x4, scoped, tag = 'scoped memory for tpu_custom_call.1']
    #allocation5 [shape = 'u8[8192]{0}', space=vmem, size = 0x2000, scoped, tag = 'output window, operand 0, single buffered']
    %6 = vsyncpa [#allocation3], 0
    %7 = vsyncpa [#allocation4], 0
    // Predicated region
    $region2: #{tpu_custom_call.1} parent=1 // pred_check
      _
    $region3: #{tpu_custom_call.1} parent=1 // pred_check_branch
      %9 = sbr.rel (0) target = $region5
    $region4: #{tpu_custom_call.1} parent=1 // pred_region
      %s11 = ssub.s32 256, 256
      %12 = vsyncadd [#allocation3], %s11
      %s13 = sshll.u32 [#allocation2], 4
      %s14 = int_to_ptr.vmem [resolvable:$true] %s13
      %19 = dma.hbm_to_vmem [thread:$0]  %s0, 256, %s14, [#allocation3], 128, 128, 8
    $region5: #{tpu_custom_call.1} parent=1 // pred_fallthru
      _
    // Predicated region
    $region6: #{tpu_custom_call.1} parent=1 // pred_check
      _
    $region7: #{tpu_custom_call.1} parent=1 // pred_check_branch
      %21 = sbr.rel (0) target = $region9
    $region8: #{tpu_custom_call.1} parent=1 // pred_region
      %22 = dma.done [#allocation3], 256
    $region9: #{tpu_custom_call.1} parent=1 // pred_fallthru
      _
    %v23 = vld [vmem:[#allocation2] sm:$0xff]
    %v24 = vld [vmem:[#allocation2 + $0x8] sm:$0xff]
    %v25 = vmax.f32 %v23, -2.5
    %v26 = vmax.f32 %v24, -2.5
    %v27 = vmin.f32 %v25, 2.5
    %v28 = vmin.f32 %v26, 2.5
    %v29 = vmin.f32 %v27, %v28
    %30 = vmin.xlane.f32.xlu0 %v29
    %v31 = vpop.xlane.xlu0 %30
    %v32 = vrot.slane %v31, 4
    %v33 = vmin.f32 %v31, %v32
    %v34 = vrot.slane %v33, 2
    %v35 = vmin.f32 %v33, %v34
    %v36 = vrot.slane %v35, 1
    %v37 = vmin.f32 %v35, %v36
    %s38 = vtos %v37
    %v39 = vmax.f32 %v27, %v28
    %40 = vmax.xlane.f32.xlu0 %v39
    %v41 = vpop.xlane.xlu0 %40
    %v42 = vrot.slane %v41, 4
    %v43 = vmax.f32 %v41, %v42
    %v44 = vrot.slane %v43, 2
    %v45 = vmax.f32 %v43, %v44
    %v46 = vrot.slane %v45, 1
    %v47 = vmax.f32 %v45, %v46
    %s48 = vtos %v47
    %s49 = ssub.f32 %s48, %s38
    %s50 = sadd.f32 %s49, 1e-08
    %v51 = vstv %s50
    %v52 = vrcp.pop %v51
    %s53 = vtos %v52
    %s54 = smul.f32 255.0, %s53
    %v55 = vrcp.pop 255.0
    %s56 = vtos %v55
    %s57 = smul.f32 %s50, %s56
    %v58 = vstv %s38
    %v59 = vsub.f32 %v27, %v58
    %v60 = vsub.f32 %v28, %v58
    %v61 = vstv %s54
    %v62 = vmul.f32 %v59, %v61
    %v63 = vmul.f32 %v60, %v61
    %v64 = vround.ne.pseudo %v62
    %v65 = vround.ne.pseudo %v63
    %v66 = vstv %s57
    %v67 = vmul.f32 %v64, %v66
    %v68 = vmul.f32 %v65, %v66
    %v69 = vadd.f32 %v67, %v58
    %v70 = vadd.f32 %v68, %v58
    %71 = vst [vmem:[#allocation5] sm:$0xff] %v69
    %72 = vst [vmem:[#allocation5 + $0x8] sm:$0xff] %v70
    // Predicated region
    $region10: #{tpu_custom_call.1} parent=1 // pred_check
      _
    $region11: #{tpu_custom_call.1} parent=1 // pred_check_branch
      %74 = sbr.rel (0) target = $region13
    $region12: #{tpu_custom_call.1} parent=1 // pred_region
      %s76 = ssub.s32 256, 256
      %77 = vsyncadd [#allocation4], %s76
      %s78 = sshll.u32 [#allocation5], 4
      %s79 = int_to_ptr.vmem [resolvable:$true] %s78
      %84 = dma.vmem_to_hbm [thread:$0]  %s79, 256, %s1, [#allocation4], 128, 128, 8
    $region13: #{tpu_custom_call.1} parent=1 // pred_fallthru
      _
    // Predicated region
    $region14: #{tpu_custom_call.1} parent=1 // pred_check
      _
    $region15: #{tpu_custom_call.1} parent=1 // pred_check_branch
      %86 = sbr.rel (0) target = $region17
    $region16: #{tpu_custom_call.1} parent=1 // pred_region
      %87 = dma.done [#allocation4], 256
    $region17: #{tpu_custom_call.1} parent=1 // pred_fallthru
      _
    %88 = vsyncpa [#allocation3], 1
    %89 = vsyncpa [#allocation4], 1

</llo_original>
